<compile_context>
chip_gen: v5e
topology: v5e:2x2
jax: 0.10.0
libtpu: 0.0.40
codegen_flags: <defaults>
</compile_context>

<pallas_src>
import numpy as np
import jax
import jax.numpy as jnp
from jax import lax
from jax.experimental import pallas as pl
from jax.experimental.pallas import tpu as pltpu


NEG_BIG = -1.0e30   # finite "-inf": padded rows/cols never create NaNs


def _round_up(x, m):
    return ((x + m - 1) // m) * m


def _vmem_budget_bytes():
    cap = 64 * 1024 * 1024            # conservative default (v7x per-core VMEM)
    try:
        cap = int(pltpu.get_tpu_info().vmem_capacity_bytes)
    except Exception:
        pass
    # ~25% headroom for Mosaic internal scratch / pipeline bookkeeping:
    # v5e/v6e -> ~96 MiB, v7x -> ~48 MiB.
    return int(cap) * 3 // 4


def _choose_tiles(B, D, vmem_budget):
    """Return (Bp, TM, TN): padded batch, row tile, column tile."""
    if B <= 256:
        # Single tile in both directions (always (8,128)-legal: blocks equal
        # the full padded array dims; pad only to the 8-sublane multiple).
        Bp = _round_up(B, 8)
        return Bp, Bp, Bp

    TN = 256
    Bp = _round_up(B, TN)
    nj = Bp // TN

    def fits(tm):
        in_bytes = (2 * tm * D * 2        # double-buffered bf16 m1 tile
                    + tm * D * 2          # scaled bf16 m1 cache (scratch)
                    + 2 * TN * D * 2)     # double-buffered bf16 m2 tile
        tmp_bytes = 6 * tm * TN * 4       # logits / p_row / masks (f32 temps)
        scr_bytes = tm * 8 + (1 << 16)    # row m/l scratch + slack
        return in_bytes + tmp_bytes + scr_bytes <= vmem_budget

    candidates = [TN * k for k in range(nj, 0, -1) if nj % k == 0]
    fitting = [c for c in candidates if fits(c)]
    if not fitting:
        return Bp, TN, TN
    multi = [c for c in fitting if Bp // c >= 2]      # keep >= 2 row tiles
    even = [c for c in multi if (Bp // c) % 2 == 0]   # prefer even for v7x megacore
    if even:
        return Bp, even[0], TN
    if multi:
        return Bp, multi[0], TN
    return Bp, fitting[0], TN


def _make_kernel(TM, TN, D, B, Bp):
    pad = (Bp != B)

    def kernel(scale_ref, m1_ref, m2_ref,
               row_lse_ref, m_col_ref, l_col_ref, diag_ref,
               a_cache, m_row_sc, l_row_sc):
        i = pl.program_id(0)          # row-tile index    ("parallel")
        j = pl.program_id(1)          # column-tile index ("arbitrary", innermost)
        nj = pl.num_programs(1)

        # ---- once per row tile: cache the scaled bf16 m1 tile, init state ---
        @pl.when(j == 0)
        def _():
            scale = scale_ref[0, 0]                      # exp(logit_scale), f32
            a_cache[...] = (m1_ref[...].astype(jnp.float32)
                            * scale).astype(jnp.bfloat16)
            m_row_sc[...] = jnp.full(m_row_sc.shape, NEG_BIG, jnp.float32)
            l_row_sc[...] = jnp.zeros(l_row_sc.shape, jnp.float32)
            diag_ref[...] = jnp.zeros(diag_ref.shape, jnp.float32)

        a16 = a_cache[...]            # (TM, D) bf16, already scaled
        b16 = m2_ref[...]             # (TN, D) bf16

        # logits[r, c] = <scale * m1_r, m2_c>.  Contract dim 1 of BOTH
        # operands so no (D, TN) transpose of the m2 tile is materialized.
        logits = lax.dot_general(
            a16, b16,
            dimension_numbers=(((1,), (1,)), ((), ())),
            preferred_element_type=jnp.float32)          # (TM, TN) f32

        if pad:
            col_ok = (j * TN + lax.broadcasted_iota(jnp.int32, (1, TN), 1)) < B
            row_ok = (i * TM + lax.broadcasted_iota(jnp.int32, (TM, 1), 0)) < B
            logits_r = jnp.where(col_ok, logits, NEG_BIG)   # mask padded cols
            logits_c = jnp.where(row_ok, logits, NEG_BIG)   # mask padded rows
        else:
            row_ok = None
            logits_r = logits
            logits_c = logits

        # ---- row-direction online logsumexp (accumulated across col tiles) --
        tile_row_max = jnp.max(logits_r, axis=-1, keepdims=True)       # (TM,1)
        m_new = jnp.maximum(m_row_sc[...], tile_row_max)
        p_row = jnp.exp(logits_r - m_new)                              # (TM,TN)
        l_row_sc[...] = (jnp.exp(m_row_sc[...] - m_new) * l_row_sc[...]
                         + jnp.sum(p_row, axis=-1, keepdims=True))
        m_row_sc[...] = m_new

        @pl.when(j == nj - 1)
        def _():
            lse = m_row_sc[...] + jnp.log(l_row_sc[...])               # (TM,1)
            if pad:
                lse = jnp.where(row_ok, lse, 0.0)
            row_lse_ref[...] = jnp.sum(lse).reshape(1, 1, 1)

        # ---- column-direction partial stats from the SAME resident tile -----
        col_max = jnp.max(logits_c, axis=0, keepdims=True)             # (1,TN)
        col_sum = jnp.sum(jnp.exp(logits_c - col_max), axis=0,
                          keepdims=True)                               # (1,TN)
        m_col_ref[0] = col_max
        l_col_ref[0] = col_sum

        # ---- diagonal (label) term: only where the global diagonal crosses --
        off = j * TN - i * TM          # local row offset of the diagonal block
        @pl.when((off >= 0) & (off < TM))
        def _():
            a_d = a_cache[pl.ds(pl.multiple_of(off, TN), TN), :]
            d = jnp.sum(a_d.astype(jnp.float32) * b16.astype(jnp.float32))
            diag_ref[...] = diag_ref[...] + d.reshape(1, 1, 1)

    return kernel


def infonce_loss(m1, m2, logit_scale_param):
    """m1, m2: [B, D] features. logit_scale_param: scalar log-space parameter."""
    B, D = m1.shape
    assert m2.shape == (B, D)

    budget = _vmem_budget_bytes()
    Bp, TM, TN = _choose_tiles(B, D, budget)
    ni, nj = Bp // TM, Bp // TN

    # Cast once in the wrapper: halves HBM->VMEM DMA bytes on the dominant m2
    # re-stream and halves input-tile VMEM footprint.
    m1b = m1.astype(jnp.bfloat16)
    m2b = m2.astype(jnp.bfloat16)
    if Bp != B:
        m1b = jnp.pad(m1b, ((0, Bp - B), (0, 0)))
        m2b = jnp.pad(m2b, ((0, Bp - B), (0, 0)))

    # exp() of the scalar parameter is hoisted to the wrapper (one scalar op).
    scale = jnp.exp(jnp.asarray(logit_scale_param, jnp.float32)).reshape(1, 1)

    kernel = _make_kernel(TM, TN, D, B, Bp)

    out_shape = (
        jax.ShapeDtypeStruct((ni, 1, 1), jnp.float32),    # sum of row-lse / row tile
        jax.ShapeDtypeStruct((ni, 1, Bp), jnp.float32),   # column max partials
        jax.ShapeDtypeStruct((ni, 1, Bp), jnp.float32),   # column sum partials
        jax.ShapeDtypeStruct((ni, 1, 1), jnp.float32),    # diag sum / row tile
    )

    row_lse_part, m_col, l_col, diag_part = pl.pallas_call(
        kernel,
        out_shape=out_shape,
        grid=(ni, nj),
        in_specs=[
            pl.BlockSpec(memory_space=pltpu.SMEM),             # exp(logit_scale)
            pl.BlockSpec((TM, D), lambda i, j: (i, 0)),        # m1 row tile (bf16)
            pl.BlockSpec((TN, D), lambda i, j: (j, 0)),        # m2 col tile (bf16)
        ],
        out_specs=(
            pl.BlockSpec((1, 1, 1), lambda i, j: (i, 0, 0)),
            pl.BlockSpec((1, 1, TN), lambda i, j: (i, 0, j)),
            pl.BlockSpec((1, 1, TN), lambda i, j: (i, 0, j)),
            pl.BlockSpec((1, 1, 1), lambda i, j: (i, 0, 0)),
        ),
        scratch_shapes=[
            pltpu.VMEM((TM, D), jnp.bfloat16),   # scaled m1 tile cache
            pltpu.VMEM((TM, 1), jnp.float32),    # running row max
            pltpu.VMEM((TM, 1), jnp.float32),    # running row sum
        ],
        compiler_params=pltpu.CompilerParams(
            dimension_semantics=("parallel", "arbitrary"),
            vmem_limit_bytes=budget,
        ),
    )(scale, m1b, m2b)

    # Tiny O(ni * B) merge of the per-row-tile column partials; all heavy work
    # (matmul, exps, reductions) already happened inside the kernel.
    m_col = m_col[:, 0, :B]                                   # (ni, B)
    l_col = l_col[:, 0, :B]
    m_glob = jnp.max(m_col, axis=0)                           # (B,)
    lse_col = m_glob + jnp.log(
        jnp.sum(l_col * jnp.exp(m_col - m_glob), axis=0))     # (B,)

    diag_sum = jnp.sum(diag_part)
    inv_b = 1.0 / B
    loss_row = (jnp.sum(row_lse_part) - diag_sum) * inv_b
    loss_col = (jnp.sum(lse_col) - diag_sum) * inv_b
    return 0.5 * (loss_row + loss_col)


def infonce_ref(m1, m2, logit_scale_param):
    """Pure-JAX reference mirroring the kernel's precision policy
    (bf16 inputs, scale applied before the bf16 cast, fp32 accumulation)."""
    scale = jnp.exp(jnp.asarray(logit_scale_param, jnp.float32))
    a = (m1.astype(jnp.bfloat16).astype(jnp.float32) * scale).astype(jnp.bfloat16)
    b = m2.astype(jnp.bfloat16)
    logits = lax.dot_general(a, b, (((1,), (1,)), ((), ())),
                             preferred_element_type=jnp.float32)
    diag = jnp.sum(a.astype(jnp.float32) * b.astype(jnp.float32), axis=-1)
    ce_row = jnp.mean(jax.nn.logsumexp(logits, axis=1) - diag)
    ce_col = jnp.mean(jax.nn.logsumexp(logits, axis=0) - diag)
    return 0.5 * (ce_row + ce_col)


def infonce_ref_f32(m1, m2, logit_scale_param):
    """Full-fp32 reference of the original PyTorch forward (spec check)."""
    scale = jnp.exp(logit_scale_param)
    logits = (m1 @ m2.T) * scale
    diag = jnp.diagonal(logits)
    ce_row = jnp.mean(jax.nn.logsumexp(logits, axis=1) - diag)
    ce_col = jnp.mean(jax.nn.logsumexp(logits.T, axis=1) - diag)
    return 0.5 * (ce_row + ce_col)


if __name__ == "__main__":
    # CLIP-style init: module arg logit_scale = 1/0.07, stored param is its log.
    logit_scale_param = jnp.asarray(np.log(1.0 / 0.07), dtype=jnp.float32)

    key = jax.random.PRNGKey(0)
    # Second shape (B=12) exercises the padded / masked path.
    for (B, D) in ((8, 32), (12, 32)):
        key, k1, k2 = jax.random.split(key, 3)
        m1 = jax.random.normal(k1, (B, D), dtype=jnp.float32)
        m2 = jax.random.normal(k2, (B, D), dtype=jnp.float32)
        # L2-normalize like typical contrastive pipelines.
        m1 = m1 / jnp.linalg.norm(m1, axis=-1, keepdims=True)
        m2 = m2 / jnp.linalg.norm(m2, axis=-1, keepdims=True)

        loss = jax.block_until_ready(infonce_loss(m1, m2, logit_scale_param))

        # Tight check against a reference using the same precision policy.
        ref = jax.block_until_ready(infonce_ref(m1, m2, logit_scale_param))
        np.testing.assert_allclose(np.asarray(loss), np.asarray(ref),
                                   rtol=1e-4, atol=1e-4)

        # Loose sanity check against pure-fp32 PyTorch-equivalent math
        # (difference is only the bf16 rounding of the MXU operands).
        ref32 = jax.block_until_ready(infonce_ref_f32(m1, m2, logit_scale_param))
        np.testing.assert_allclose(np.asarray(loss), np.asarray(ref32),
                                   rtol=2e-1, atol=5e-2)

    print("KERNEL_OK")
</pallas_src>

<mosaic_0001>
module attributes {stable_mosaic.version = 11 : i64} {
  func.func @kernel(%arg0: i32, %arg1: i32, %arg2: memref<1x1xf32, #tpu.memory_space<smem>>, %arg3: memref<8x32xbf16, #tpu.memory_space<vmem>>, %arg4: memref<8x32xbf16, #tpu.memory_space<vmem>>, %arg5: memref<1x1x1xf32, #tpu.memory_space<vmem>>, %arg6: memref<1x1x8xf32, #tpu.memory_space<vmem>>, %arg7: memref<1x1x8xf32, #tpu.memory_space<vmem>>, %arg8: memref<1x1x1xf32, #tpu.memory_space<vmem>>, %arg9: memref<8x32xbf16, #tpu.memory_space<vmem>>, %arg10: memref<8x1xf32, #tpu.memory_space<vmem>>, %arg11: memref<8x1xf32, #tpu.memory_space<vmem>>) attributes {dimension_semantics = [#tpu.dimension_semantics<parallel>, #tpu.dimension_semantics<arbitrary>], iteration_bounds = array<i64: 1, 1>, scalar_prefetch = 0 : i64, scratch_operands = 3 : i64, tpu.core_type = #tpu.core_type<tc>, window_params = [{transform_indices = @transform_0, window_bounds = array<i64: 1, 1>}, {transform_indices = @transform_1, window_bounds = array<i64: 8, 32>}, {transform_indices = @transform_2, window_bounds = array<i64: 8, 32>}, {transform_indices = @transform_3, window_bounds = array<i64: 1, 1, 1>}, {transform_indices = @transform_4, window_bounds = array<i64: 1, 1, 8>}, {transform_indices = @transform_5, window_bounds = array<i64: 1, 1, 8>}, {transform_indices = @transform_6, window_bounds = array<i64: 1, 1, 1>}]} {
    %c0_i32 = arith.constant 0 : i32
    %0 = arith.cmpi eq, %arg1, %c0_i32 : i32
    %1 = arith.extui %0 : i1 to i32
    %c0_i32_0 = arith.constant 0 : i32
    %2 = arith.cmpi ne, %1, %c0_i32_0 : i32
    scf.if %2 {
      %c0_30 = arith.constant 0 : index
      %c0_31 = arith.constant 0 : index
      %47 = memref.load %arg2[%c0_30, %c0_31] : memref<1x1xf32, #tpu.memory_space<smem>>
      %c0_32 = arith.constant 0 : index
      %c0_33 = arith.constant 0 : index
      %48 = vector.load %arg3[%c0_32, %c0_33] : memref<8x32xbf16, #tpu.memory_space<vmem>>, vector<8x32xbf16>
      %49 = arith.extf %48 : vector<8x32xbf16> to vector<8x32xf32>
      %50 = vector.broadcast %47 : f32 to vector<8x32xf32>
      %51 = arith.mulf %49, %50 : vector<8x32xf32>
      %52 = arith.truncf %51 : vector<8x32xf32> to vector<8x32xbf16>
      %c0_34 = arith.constant 0 : index
      %c0_35 = arith.constant 0 : index
      %53 = vector.load %arg9[%c0_34, %c0_35] : memref<8x32xbf16, #tpu.memory_space<vmem>>, vector<8x32xbf16>
      tpu.vector_store %arg9[%c0_34, %c0_35], %52 {strides = array<i32>} : memref<8x32xbf16, #tpu.memory_space<vmem>>, vector<8x32xbf16>,
      %cst_36 = arith.constant -1.000000e+30 : f32
      %54 = vector.broadcast %cst_36 : f32 to vector<8x1xf32>
      %c0_37 = arith.constant 0 : index
      %c0_38 = arith.constant 0 : index
      %55 = vector.load %arg10[%c0_37, %c0_38] : memref<8x1xf32, #tpu.memory_space<vmem>>, vector<8x1xf32>
      tpu.vector_store %arg10[%c0_37, %c0_38], %54 {strides = array<i32>} : memref<8x1xf32, #tpu.memory_space<vmem>>, vector<8x1xf32>,
      %cst_39 = arith.constant 0.000000e+00 : f32
      %56 = vector.broadcast %cst_39 : f32 to vector<8x1xf32>
      %c0_40 = arith.constant 0 : index
      %c0_41 = arith.constant 0 : index
      %57 = vector.load %arg11[%c0_40, %c0_41] : memref<8x1xf32, #tpu.memory_space<vmem>>, vector<8x1xf32>
      tpu.vector_store %arg11[%c0_40, %c0_41], %56 {strides = array<i32>} : memref<8x1xf32, #tpu.memory_space<vmem>>, vector<8x1xf32>,
      %cst_42 = arith.constant 0.000000e+00 : f32
      %58 = vector.broadcast %cst_42 : f32 to vector<1x1x1xf32>
      %c0_43 = arith.constant 0 : index
      %c0_44 = arith.constant 0 : index
      %c0_45 = arith.constant 0 : index
      %59 = vector.load %arg8[%c0_43, %c0_44, %c0_45] : memref<1x1x1xf32, #tpu.memory_space<vmem>>, vector<1x1x1xf32>
      tpu.vector_store %arg8[%c0_43, %c0_44, %c0_45], %58 {strides = array<i32>} : memref<1x1x1xf32, #tpu.memory_space<vmem>>, vector<1x1x1xf32>,
    } else {
    }
    %c0 = arith.constant 0 : index
    %c0_1 = arith.constant 0 : index
    %3 = vector.load %arg9[%c0, %c0_1] : memref<8x32xbf16, #tpu.memory_space<vmem>>, vector<8x32xbf16>
    %c0_2 = arith.constant 0 : index
    %c0_3 = arith.constant 0 : index
    %4 = vector.load %arg4[%c0_2, %c0_3] : memref<8x32xbf16, #tpu.memory_space<vmem>>, vector<8x32xbf16>
    %cst = arith.constant dense<0.000000e+00> : vector<8x8xf32>
    %5 = tpu.matmul %3, %4, %cst {dimension_numbers = #tpu.dot_dimension_numbers<[1], [1], [0], [0], [0, 0, 1, 0], [], []>} : vector<8x32xbf16>, vector<8x32xbf16>, vector<8x8xf32> -> vector<8x8xf32>
    %cst_4 = arith.constant dense<0xFF800000> : vector<8xf32>
    %6 = vector.multi_reduction <maximumf>, %5, %cst_4 [1] : vector<8x8xf32> to vector<8xf32>
    %7 = vector.shape_cast %6 : vector<8xf32> to vector<8x1xf32>
    %c0_5 = arith.constant 0 : index
    %c0_6 = arith.constant 0 : index
    %8 = vector.load %arg10[%c0_5, %c0_6] : memref<8x1xf32, #tpu.memory_space<vmem>>, vector<8x1xf32>
    %9 = arith.maximumf %8, %7 : vector<8x1xf32>
    %10 = vector.broadcast %9 : vector<8x1xf32> to vector<8x8xf32>
    %11 = arith.subf %5, %10 : vector<8x8xf32>
    %12 = math.exp %11 : vector<8x8xf32>
    %c0_7 = arith.constant 0 : index
    %c0_8 = arith.constant 0 : index
    %13 = vector.load %arg10[%c0_7, %c0_8] : memref<8x1xf32, #tpu.memory_space<vmem>>, vector<8x1xf32>
    %14 = arith.subf %13, %9 : vector<8x1xf32>
    %15 = math.exp %14 : vector<8x1xf32>
    %c0_9 = arith.constant 0 : index
    %c0_10 = arith.constant 0 : index
    %16 = vector.load %arg11[%c0_9, %c0_10] : memref<8x1xf32, #tpu.memory_space<vmem>>, vector<8x1xf32>
    %17 = arith.mulf %15, %16 : vector<8x1xf32>
    %cst_11 = arith.constant dense<0.000000e+00> : vector<8xf32>
    %18 = vector.multi_reduction <add>, %12, %cst_11 [1] : vector<8x8xf32> to vector<8xf32>
    %19 = vector.shape_cast %18 : vector<8xf32> to vector<8x1xf32>
    %20 = arith.addf %17, %19 : vector<8x1xf32>
    %c0_12 = arith.constant 0 : index
    %c0_13 = arith.constant 0 : index
    %21 = vector.load %arg11[%c0_12, %c0_13] : memref<8x1xf32, #tpu.memory_space<vmem>>, vector<8x1xf32>
    tpu.vector_store %arg11[%c0_12, %c0_13], %20 {strides = array<i32>} : memref<8x1xf32, #tpu.memory_space<vmem>>, vector<8x1xf32>,
    %c0_14 = arith.constant 0 : index
    %c0_15 = arith.constant 0 : index
    %22 = vector.load %arg10[%c0_14, %c0_15] : memref<8x1xf32, #tpu.memory_space<vmem>>, vector<8x1xf32>
    tpu.vector_store %arg10[%c0_14, %c0_15], %9 {strides = array<i32>} : memref<8x1xf32, #tpu.memory_space<vmem>>, vector<8x1xf32>,
    %c0_i32_16 = arith.constant 0 : i32
    %23 = arith.cmpi eq, %arg1, %c0_i32_16 : i32
    %24 = arith.extui %23 : i1 to i32
    %c0_i32_17 = arith.constant 0 : i32
    %25 = arith.cmpi ne, %24, %c0_i32_17 : i32
    scf.if %25 {
      %c0_30 = arith.constant 0 : index
      %c0_31 = arith.constant 0 : index
      %47 = vector.load %arg10[%c0_30, %c0_31] : memref<8x1xf32, #tpu.memory_space<vmem>>, vector<8x1xf32>
      %c0_32 = arith.constant 0 : index
      %c0_33 = arith.constant 0 : index
      %48 = vector.load %arg11[%c0_32, %c0_33] : memref<8x1xf32, #tpu.memory_space<vmem>>, vector<8x1xf32>
      %49 = math.log %48 : vector<8x1xf32>
      %50 = arith.addf %47, %49 : vector<8x1xf32>
      %51 = vector.shape_cast %50 : vector<8x1xf32> to vector<1x8x1xf32>
      %cst_34 = arith.constant dense<0.000000e+00> : vector<1xf32>
      %52 = vector.multi_reduction <add>, %51, %cst_34 [1, 2] : vector<1x8x1xf32> to vector<1xf32>
      %53 = vector.shape_cast %52 : vector<1xf32> to vector<1x1x1xf32>
      %54 = vector.extract %53[0, 0, 0] : f32 from vector<1x1x1xf32>
      %55 = vector.broadcast %54 : f32 to vector<1x1x1xf32>
      %c0_35 = arith.constant 0 : index
      %c0_36 = arith.constant 0 : index
      %c0_37 = arith.constant 0 : index
      %56 = vector.load %arg5[%c0_35, %c0_36, %c0_37] : memref<1x1x1xf32, #tpu.memory_space<vmem>>, vector<1x1x1xf32>
      tpu.vector_store %arg5[%c0_35, %c0_36, %c0_37], %55 {strides = array<i32>} : memref<1x1x1xf32, #tpu.memory_space<vmem>>, vector<1x1x1xf32>,
    } else {
    }
    %cst_18 = arith.constant dense<0xFF800000> : vector<8xf32>
    %26 = vector.multi_reduction <maximumf>, %5, %cst_18 [0] : vector<8x8xf32> to vector<8xf32>
    %27 = vector.shape_cast %26 : vector<8xf32> to vector<1x8xf32>
    %28 = vector.broadcast %27 : vector<1x8xf32> to vector<8x8xf32>
    %29 = arith.subf %5, %28 : vector<8x8xf32>
    %30 = math.exp %29 : vector<8x8xf32>
    %cst_19 = arith.constant dense<0.000000e+00> : vector<8xf32>
    %31 = vector.multi_reduction <add>, %30, %cst_19 [0] : vector<8x8xf32> to vector<8xf32>
    %32 = vector.shape_cast %31 : vector<8xf32> to vector<1x8xf32>
    %c0_20 = arith.constant 0 : index
    %c0_21 = arith.constant 0 : index
    %c0_22 = arith.constant 0 : index
    %33 = vector.load %arg6[%c0_20, %c0_21, %c0_22] : memref<1x1x8xf32, #tpu.memory_space<vmem>>, vector<1x1x8xf32>
    %34 = vector.shape_cast %33 : vector<1x1x8xf32> to vector<1x8xf32>
    %35 = vector.shape_cast %27 : vector<1x8xf32> to vector<1x1x8xf32>
    tpu.vector_store %arg6[%c0_20, %c0_21, %c0_22], %35 {strides = array<i32>} : memref<1x1x8xf32, #tpu.memory_space<vmem>>, vector<1x1x8xf32>,
    %c0_23 = arith.constant 0 : index
    %c0_24 = arith.constant 0 : index
    %c0_25 = arith.constant 0 : index
    %36 = vector.load %arg7[%c0_23, %c0_24, %c0_25] : memref<1x1x8xf32, #tpu.memory_space<vmem>>, vector<1x1x8xf32>
    %37 = vector.shape_cast %36 : vector<1x1x8xf32> to vector<1x8xf32>
    %38 = vector.shape_cast %32 : vector<1x8xf32> to vector<1x1x8xf32>
    tpu.vector_store %arg7[%c0_23, %c0_24, %c0_25], %38 {strides = array<i32>} : memref<1x1x8xf32, #tpu.memory_space<vmem>>, vector<1x1x8xf32>,
    %c8_i32 = arith.constant 8 : i32
    %39 = arith.muli %arg1, %c8_i32 : i32
    %c8_i32_26 = arith.constant 8 : i32
    %40 = arith.muli %arg0, %c8_i32_26 : i32
    %41 = arith.subi %39, %40 : i32
    %c0_i32_27 = arith.constant 0 : i32
    %42 = arith.cmpi sge, %41, %c0_i32_27 : i32
    %c8_i32_28 = arith.constant 8 : i32
    %43 = arith.cmpi slt, %41, %c8_i32_28 : i32
    %44 = arith.andi %42, %43 : i1
    %45 = arith.extui %44 : i1 to i32
    %c0_i32_29 = arith.constant 0 : i32
    %46 = arith.cmpi ne, %45, %c0_i32_29 : i32
    scf.if %46 {
      %47 = tpu.assume_multiple %41, 8 : i32
      %48 = arith.index_cast %47 : i32 to index
      %c0_30 = arith.constant 0 : index
      %49 = vector.load %arg9[%48, %c0_30] : memref<8x32xbf16, #tpu.memory_space<vmem>>, vector<8x32xbf16>
      %50 = arith.extf %49 : vector<8x32xbf16> to vector<8x32xf32>
      %51 = arith.extf %4 : vector<8x32xbf16> to vector<8x32xf32>
      %52 = arith.mulf %50, %51 : vector<8x32xf32>
      %53 = vector.shape_cast %52 : vector<8x32xf32> to vector<1x8x32xf32>
      %cst_31 = arith.constant dense<0.000000e+00> : vector<1xf32>
      %54 = vector.multi_reduction <add>, %53, %cst_31 [1, 2] : vector<1x8x32xf32> to vector<1xf32>
      %55 = vector.shape_cast %54 : vector<1xf32> to vector<1x1x1xf32>
      %56 = vector.extract %55[0, 0, 0] : f32 from vector<1x1x1xf32>
      %c0_32 = arith.constant 0 : index
      %c0_33 = arith.constant 0 : index
      %c0_34 = arith.constant 0 : index
      %57 = vector.load %arg8[%c0_32, %c0_33, %c0_34] : memref<1x1x1xf32, #tpu.memory_space<vmem>>, vector<1x1x1xf32>
      %58 = vector.broadcast %56 : f32 to vector<1x1x1xf32>
      %59 = arith.addf %57, %58 : vector<1x1x1xf32>
      %c0_35 = arith.constant 0 : index
      %c0_36 = arith.constant 0 : index
      %c0_37 = arith.constant 0 : index
      %60 = vector.load %arg8[%c0_35, %c0_36, %c0_37] : memref<1x1x1xf32, #tpu.memory_space<vmem>>, vector<1x1x1xf32>
      tpu.vector_store %arg8[%c0_35, %c0_36, %c0_37], %59 {strides = array<i32>} : memref<1x1x1xf32, #tpu.memory_space<vmem>>, vector<1x1x1xf32>,
    } else {
    }
    return
  }
  func.func @transform_0(%arg0: i32, %arg1: i32) -> (i32, i32) {
    %c0_i32 = arith.constant 0 : i32
    %c0_i32_0 = arith.constant 0 : i32
    %c0_i32_1 = arith.constant 0 : i32
    return %c0_i32, %c0_i32_0 : i32, i32
  }
  func.func @transform_1(%arg0: i32, %arg1: i32) -> (i32, i32) {
    %c0_i32 = arith.constant 0 : i32
    %c0_i32_0 = arith.constant 0 : i32
    return %arg0, %c0_i32 : i32, i32
  }
  func.func @transform_2(%arg0: i32, %arg1: i32) -> (i32, i32) {
    %c0_i32 = arith.constant 0 : i32
    %c0_i32_0 = arith.constant 0 : i32
    return %arg1, %c0_i32 : i32, i32
  }
  func.func @transform_3(%arg0: i32, %arg1: i32) -> (i32, i32, i32) {
    %c0_i32 = arith.constant 0 : i32
    %c0_i32_0 = arith.constant 0 : i32
    %c0_i32_1 = arith.constant 0 : i32
    return %arg0, %c0_i32, %c0_i32_0 : i32, i32, i32
  }
  func.func @transform_4(%arg0: i32, %arg1: i32) -> (i32, i32, i32) {
    %c0_i32 = arith.constant 0 : i32
    %c0_i32_0 = arith.constant 0 : i32
    return %arg0, %c0_i32, %arg1 : i32, i32, i32
  }
  func.func @transform_5(%arg0: i32, %arg1: i32) -> (i32, i32, i32) {
    %c0_i32 = arith.constant 0 : i32
    %c0_i32_0 = arith.constant 0 : i32
    return %arg0, %c0_i32, %arg1 : i32, i32, i32
  }
  func.func @transform_6(%arg0: i32, %arg1: i32) -> (i32, i32, i32) {
    %c0_i32 = arith.constant 0 : i32
    %c0_i32_0 = arith.constant 0 : i32
    %c0_i32_1 = arith.constant 0 : i32
    return %arg0, %c0_i32, %c0_i32_0 : i32, i32, i32
  }
}

</mosaic_0001>

<llo_original>
// kernel: tpu_custom_call.1
$region0: #{tpu_custom_call.1}
  #allocation0 [shape = 'u32[]', space=smem, size = 0x4, offset = 0x4, fixed_abs, tag = 'smem constant byte address 0x4 - core index']
  #allocation1 [shape = 'u32[72,128]{1,0:T(1,128)}', space=vmem, size = 0x9000, scoped, tag = 'internal scratch']
  #allocation2 [shape = 'bf16[8,32]{1,0:T(8,128)(2,1)}', space=vmem, size = 0x800, scoped, tag = 'scratch operand']
  #allocation3 [shape = 'f32[8,1]{1,0:T(8,128)}', space=vmem, size = 0x1000, scoped, tag = 'scratch operand']
  #allocation4 [shape = 'f32[8,1]{1,0:T(8,128)}', space=vmem, size = 0x1000, scoped, tag = 'scratch operand']
  #allocation5 [shape = 'f32[1,1]{1,0:T(1,128)S(6)}', space=smem, size = 0x200, scoped, tag = 'scoped memory for tpu_custom_call.1']
  %s0 = inlined_call_operand.<no memory space> [shape: f32[1,1], index: 0, kind: input, shape index: {}]
  %s1 = inlined_call_operand.hbm [shape: bf16[8,32], index: 1, kind: input, shape index: {}]
  %s2 = inlined_call_operand.hbm [shape: bf16[8,32], index: 2, kind: input, shape index: {}]
  %s3 = inlined_call_operand.hbm [shape: f32[1,1,1], index: 3, kind: output, shape index: {0}]
  %s4 = inlined_call_operand.hbm [shape: f32[1,1,8], index: 4, kind: output, shape index: {1}]
  %s5 = inlined_call_operand.hbm [shape: f32[1,1,8], index: 5, kind: output, shape index: {2}]
  %s6 = inlined_call_operand.hbm [shape: f32[1,1,1], index: 6, kind: output, shape index: {3}]
  %7 = xla_tuple %s3, %s4, %s5, %s6
  %s8 = sld [smem:[#allocation0]]
  $region66: #{tpu_custom_call.1} parent=0
    _
  %s10 = ssub.s32 1, %s8
  %s11 = scalar_select 0, %s10, %s8
  %12 = sst [smem:[#allocation5]] %s0
  $region1: #{tpu_custom_call.1} parent=0
    #allocation6 [shape = 'u8[2048]{0}', space=vmem, size = 0x800, scoped, tag = 'input window, operand 1, single buffered']
    #allocation7 [shape = 's32[1]{0}', space=sflag, size = 0x4, scoped, tag = 'scoped memory for tpu_custom_call.1']
    #allocation8 [shape = 's32[1]{0}', space=sflag, size = 0x4, scoped, tag = 'scoped memory for tpu_custom_call.1']
    #allocation9 [shape = 'u8[2048]{0}', space=vmem, size = 0x800, scoped, tag = 'input window, operand 2, single buffered']
    #allocation10 [shape = 's32[1]{0}', space=sflag, size = 0x4, scoped, tag = 'scoped memory for tpu_custom_call.1']
    #allocation11 [shape = 'u8[512]{0}', space=vmem, size = 0x400, scoped, tag = 'output window, operand 0, single buffered']
    #allocation12 [shape = 'u8[512]{0}', space=vmem, size = 0x400, scoped, tag = 'output window, operand 1, single buffered']
    #allocation13 [shape = 's32[1]{0}', space=sflag, size = 0x4, scoped, tag = 'scoped memory for tpu_custom_call.1']
    #allocation14 [shape = 'u8[512]{0}', space=vmem, size = 0x400, scoped, tag = 'output window, operand 2, single buffered']
    #allocation15 [shape = 'u8[512]{0}', space=vmem, size = 0x400, scoped, tag = 'output window, operand 3, single buffered']
    #allocation16 [shape = 's32[1]{0}', space=sflag, size = 0x4, scoped, tag = 'scoped memory for tpu_custom_call.1']
    %13 = vsyncpa [#allocation7], 0
    %14 = vsyncpa [#allocation10], 0
    %15 = vsyncpa [#allocation8], 0
    %16 = vsyncpa [#allocation13], 0
    %17 = vsyncpa [#allocation16], 0
    // Predicated region
    $region2: #{tpu_custom_call.1} parent=1 // pred_check
      _
    $region3: #{tpu_custom_call.1} parent=1 // pred_check_branch
      %19 = sbr.rel (0) target = $region5
    $region4: #{tpu_custom_call.1} parent=1 // pred_region
      _
    $region5: #{tpu_custom_call.1} parent=1 // pred_fallthru
      _
    // Predicated region
    $region6: #{tpu_custom_call.1} parent=1 // pred_check
      _
    $region7: #{tpu_custom_call.1} parent=1 // pred_check_branch
      %21 = sbr.rel (0) target = $region9
    $region8: #{tpu_custom_call.1} parent=1 // pred_region
      %23 = vsyncadd [#allocation7], 0
      %s25 = sshll.u32 %s1, 4
      %s26 = int_to_ptr.hbm [resolvable:$true] %s25
      %s27 = sshll.u32 [#allocation6], 4
      %s28 = int_to_ptr.vmem [resolvable:$true] %s27
      %30 = dma.hbm_to_vmem [thread:$0]  %s26, 64, %s28, [#allocation7]
    $region9: #{tpu_custom_call.1} parent=1 // pred_fallthru
      _
    // Predicated region
    $region10: #{tpu_custom_call.1} parent=1 // pred_check
      _
    $region11: #{tpu_custom_call.1} parent=1 // pred_check_branch
      %32 = sbr.rel (0) target = $region13
    $region12: #{tpu_custom_call.1} parent=1 // pred_region
      %34 = vsyncadd [#allocation10], 0
      %s36 = sshll.u32 %s2, 4
      %s37 = int_to_ptr.hbm [resolvable:$true] %s36
      %s38 = sshll.u32 [#allocation9], 4
      %s39 = int_to_ptr.vmem [resolvable:$true] %s38
      %41 = dma.hbm_to_vmem [thread:$0]  %s37, 64, %s39, [#allocation10]
    $region13: #{tpu_custom_call.1} parent=1 // pred_fallthru
      _
    // Predicated region
    $region14: #{tpu_custom_call.1} parent=1 // pred_check
      _
    $region15: #{tpu_custom_call.1} parent=1 // pred_check_branch
      %43 = sbr.rel (0) target = $region17
    $region16: #{tpu_custom_call.1} parent=1 // pred_region
      %45 = dma.done [#allocation7], 64
    $region17: #{tpu_custom_call.1} parent=1 // pred_fallthru
      _
    // Predicated region
    $region18: #{tpu_custom_call.1} parent=1 // pred_check
      _
    $region19: #{tpu_custom_call.1} parent=1 // pred_check_branch
      %47 = sbr.rel (0) target = $region21
    $region20: #{tpu_custom_call.1} parent=1 // pred_region
      %49 = dma.done [#allocation10], 64
    $region21: #{tpu_custom_call.1} parent=1 // pred_fallthru
      _
    %p51 = scmp.eq.s32.totalorder 0, 0
    // Predicated region
    $region22: #{tpu_custom_call.1} parent=1 // pred_check
      %p52 = pneg %p51
    $region23: #{tpu_custom_call.1} parent=1 // pred_check_branch
      %54 = sbr.rel (%p52) target = $region25
    $region24: #{tpu_custom_call.1} parent=1 // pred_region
      %s55 = sld [smem:[#allocation5]]
      %v56 = vld [vmem:[#allocation6] sm:$0xf]
      %v57 = vunpack.c.l.bf16 %v56
      %v58 = vstv %s55
      %v59 = vmul.f32 %v57, %v58
      %v60 = vpack.c.bf16 %v59, %v59
      %vm61 = vcmask 257024
      %62 = vst.msk [vmem:[#allocation2] sm:$0xf] %vm61, %v60
      %vm63 = vcmask 7168
      %64 = vst.msk [vmem:[#allocation3] sm:$0xff] %vm63, -1e+30
      %65 = vst.msk [vmem:[#allocation4] sm:$0xff] %vm63, 0.0
      %vm66 = vcmask 0
      %67 = vst.msk [vmem:[#allocation15] sm:$0x1] %vm66, 0.0
    $region25: #{tpu_custom_call.1} parent=1 // pred_fallthru
      _
    %v68 = vld [vmem:[#allocation2] sm:$0xf]
    %v69 = vld [vmem:[#allocation9] sm:$0xf]
    %vm70 = vcmask 261120
    %v72 = vsel %vm70, %v68, 0
    %v75 = vsel %vm70, %v69, 0
    %77 = vmatpush.bf16.xpose.msra.mxu0 0
    %78 = vmatpush.bf16.xpose.msra.mxu0 0
    %79 = vmatpush.bf16.xpose.msra.mxu0 0
    %80 = vmatpush.bf16.xpose.msra.mxu0 0
    %81 = vmatpush.bf16.xpose.msra.mxu0 0
    %82 = vmatpush.bf16.xpose.msra.mxu0 0
    %83 = vmatpush.bf16.xpose.msra.mxu0 0
    %84 = vmatpush.bf16.xpose.msra.mxu0 %v75
    %85 = vmatmul.bf16.gmra.mxu0 %v72
    %v86 = vpop.f32.mrf.mxu0
    %v87 = vadd.f32 0.0, %v86
    %v88 = vpop.f32.mrf.mxu0
    %89 = vdwg.mxu0
    %vm90 = vcmask 64512
    %v91 = vsel %vm90, %v87, -inf
    %92 = vmax.xlane.f32.xlu0 %v91
    %v93 = vpop.xlane.xlu0 %92
    %v94 = vld [vmem:[#allocation3] sm:$0xff]
    %v95 = vmax.f32 %v94, %v93
    %97 = vset.pattern.permute.xlu0 0
    %98 = vperm.xlu0 %97, %v95
    %v99 = vpop.permute.xlu0 %98
    %v101 = vsub.f32 %v87, %v99
    %v102 = vmul.f32 %v101, 1.442695
    %v103 = vpow.pop %v102
    %v104 = vsub.f32 %v94, %v95
    %v105 = vmul.f32 %v104, 1.442695
    %v106 = vpow.pop %v105
    %v107 = vld [vmem:[#allocation4] sm:$0xff]
    %v108 = vmul.f32 %v106, %v107
    %v109 = vsel %vm90, %v103, 0.0
    %110 = vadd.xlane.f32.xlu0 %v109
    %v111 = vpop.xlane.xlu0 %110
    %v112 = vadd.f32 %v108, %v111
    %vm113 = vcmask 7168
    %114 = vst.msk [vmem:[#allocation4] sm:$0xff] %vm113, %v112
    %115 = vst.msk [vmem:[#allocation3] sm:$0xff] %vm113, %v95
    // Predicated region
    $region26: #{tpu_custom_call.1} parent=1 // pred_check
      %p116 = pneg %p51
    $region27: #{tpu_custom_call.1} parent=1 // pred_check_branch
      %118 = sbr.rel (%p116) target = $region29
    $region28: #{tpu_custom_call.1} parent=1 // pred_region
      %v119 = vld [vmem:[#allocation3] sm:$0xff]
      %v120 = vld [vmem:[#allocation4] sm:$0xff]
      %v121 = vlog2.pop %v120
      %v122 = vmul.f32 %v121, 0.6931472
      %v123 = vadd.f32 %v119, %v122
      %v124 = vsel %vm113, %v123, 0.0
      %125 = vadd.xlane.f32.xlu0 %v124
      %v126 = vpop.xlane.xlu0 %125
      %v127 = vrot.slane %v126, 4
      %v128 = vadd.f32 %v126, %v127
      %v129 = vrot.slane %v128, 2
      %v130 = vadd.f32 %v128, %v129
      %v131 = vrot.slane %v130, 1
      %v132 = vadd.f32 %v130, %v131
      %s133 = vtos %v132
      %v134 = vstv %s133
      %vm135 = vcmask 0
      %136 = vst.msk [vmem:[#allocation11] sm:$0x1] %vm135, %v134
    $region29: #{tpu_custom_call.1} parent=1 // pred_fallthru
      _
    %v137 = vrot.slane %v91, 4
    %v138 = vmax.f32 %v91, %v137
    %v139 = vrot.slane %v138, 2
    %v140 = vmax.f32 %v138, %v139
    %v141 = vrot.slane %v140, 1
    %v142 = vmax.f32 %v140, %v141
    %v143 = vsub.f32 %v87, %v142
    %v144 = vmul.f32 %v143, 1.442695
    %v145 = vpow.pop %v144
    %v146 = vsel %vm90, %v145, 0.0
    %v147 = vrot.slane %v146, 4
    %v148 = vadd.f32 %v146, %v147
    %v149 = vrot.slane %v148, 2
    %v150 = vadd.f32 %v148, %v149
    %v151 = vrot.slane %v150, 1
    %v152 = vadd.f32 %v150, %v151
    %vm153 = vcmask 57344
    %154 = vst.msk [vmem:[#allocation12] sm:$0x1] %vm153, %v142
    %155 = vst.msk [vmem:[#allocation14] sm:$0x1] %vm153, %v152
    %s156 = smul.u32 0, 8
    %s157 = smul.u32 0, 8
    %s158 = ssub.s32 %s156, %s157
    %p159 = scmp.ge.s32.totalorder %s158, 0
    %p160 = scmp.lt.s32.totalorder %s158, 8
    %p161 = pnand %p159, %p160
    %p162 = pneg %p161
    // Predicated region
    $region30: #{tpu_custom_call.1} parent=1 // pred_check
      _
    $region31: #{tpu_custom_call.1} parent=1 // pred_check_branch
      %164 = sbr.rel (%p161) target = $region33
    $region32: #{tpu_custom_call.1} parent=1 // pred_region
      %s165 = sshra.s32 %s158, 3
      %s166 = sand.u32 %s158, 7
      %s167 = smul.addr %s165, 4
      %s168 = scalar_lea.vmem [#allocation2], %s167
      %v169 = vld [vmem:[%s168] sm:$0xf]
      %v170 = vunpack.c.l.bf16 %v169
      %v171 = vunpack.c.l.bf16 %v69
      %v172 = vmul.f32 %v170, %v171
      %v173 = vsel %vm70, %v172, 0.0
      %174 = vadd.xlane.f32.xlu0 %v173
      %v175 = vpop.xlane.xlu0 %174
      %v176 = vrot.slane %v175, 4
      %v177 = vadd.f32 %v175, %v176
      %v178 = vrot.slane %v177, 2
      %v179 = vadd.f32 %v177, %v178
      %v180 = vrot.slane %v179, 1
      %v181 = vadd.f32 %v179, %v180
      %s182 = vtos %v181
      %v183 = vld [vmem:[#allocation15] sm:$0x1]
      %v184 = vstv %s182
      %v185 = vadd.f32 %v183, %v184
      %vm186 = vcmask 0
      %187 = vst.msk [vmem:[#allocation15] sm:$0x1] %vm186, %v185
    $region33: #{tpu_custom_call.1} parent=1 // pred_fallthru
      _
    // Predicated region
    $region34: #{tpu_custom_call.1} parent=1 // pred_check
      _
    $region35: #{tpu_custom_call.1} parent=1 // pred_check_branch
      %189 = sbr.rel (0) target = $region37
    $region36: #{tpu_custom_call.1} parent=1 // pred_region
      %191 = vsyncadd [#allocation8], 0
      %s193 = sshll.u32 [#allocation11], 4
      %s194 = int_to_ptr.vmem [resolvable:$true] %s193
      %s195 = sshll.u32 %s3, 4
      %s196 = int_to_ptr.hbm [resolvable:$true] %s195
      %198 = dma.vmem_to_hbm [thread:$0]  %s194, 16, %s196, [#allocation8]
    $region37: #{tpu_custom_call.1} parent=1 // pred_fallthru
      _
    // Predicated region
    $region38: #{tpu_custom_call.1} parent=1 // pred_check
      _
    $region39: #{tpu_custom_call.1} parent=1 // pred_check_branch
      %200 = sbr.rel (0) target = $region41
    $region40: #{tpu_custom_call.1} parent=1 // pred_region
      %202 = vsyncadd [#allocation13], 0
      %s204 = sshll.u32 [#allocation12], 4
      %s205 = int_to_ptr.vmem [resolvable:$true] %s204
      %s206 = sshll.u32 %s4, 4
      %s207 = int_to_ptr.hbm [resolvable:$true] %s206
      %209 = dma.vmem_to_hbm [thread:$0]  %s205, 16, %s207, [#allocation13]
    $region41: #{tpu_custom_call.1} parent=1 // pred_fallthru
      _
    // Predicated region
    $region42: #{tpu_custom_call.1} parent=1 // pred_check
      _
    $region43: #{tpu_custom_call.1} parent=1 // pred_check_branch
      %211 = sbr.rel (0) target = $region45
    $region44: #{tpu_custom_call.1} parent=1 // pred_region
      %213 = vsyncadd [#allocation13], 0
      %s215 = sshll.u32 [#allocation14], 4
      %s216 = int_to_ptr.vmem [resolvable:$true] %s215
      %s217 = sshll.u32 %s5, 4
      %s218 = int_to_ptr.hbm [resolvable:$true] %s217
      %220 = dma.vmem_to_hbm [thread:$0]  %s216, 16, %s218, [#allocation13]
    $region45: #{tpu_custom_call.1} parent=1 // pred_fallthru
      _
    // Predicated region
    $region46: #{tpu_custom_call.1} parent=1 // pred_check
      _
    $region47: #{tpu_custom_call.1} parent=1 // pred_check_branch
      %222 = sbr.rel (0) target = $region49
    $region48: #{tpu_custom_call.1} parent=1 // pred_region
      %224 = vsyncadd [#allocation16], 0
      %s226 = sshll.u32 [#allocation15], 4
      %s227 = int_to_ptr.vmem [resolvable:$true] %s226
      %s228 = sshll.u32 %s6, 4
      %s229 = int_to_ptr.hbm [resolvable:$true] %s228
      %231 = dma.vmem_to_hbm [thread:$0]  %s227, 16, %s229, [#allocation16]
    $region49: #{tpu_custom_call.1} parent=1 // pred_fallthru
      _
    // Predicated region
    $region50: #{tpu_custom_call.1} parent=1 // pred_check
      _
    $region51: #{tpu_custom_call.1} parent=1 // pred_check_branch
      %233 = sbr.rel (0) target = $region53
    $region52: #{tpu_custom_call.1} parent=1 // pred_region
      %235 = dma.done [#allocation8], 16
    $region53: #{tpu_custom_call.1} parent=1 // pred_fallthru
      _
    // Predicated region
    $region54: #{tpu_custom_call.1} parent=1 // pred_check
      _
    $region55: #{tpu_custom_call.1} parent=1 // pred_check_branch
      %237 = sbr.rel (0) target = $region57
    $region56: #{tpu_custom_call.1} parent=1 // pred_region
      %239 = dma.done [#allocation13], 16
    $region57: #{tpu_custom_call.1} parent=1 // pred_fallthru
      _
    // Predicated region
    $region58: #{tpu_custom_call.1} parent=1 // pred_check
      _
    $region59: #{tpu_custom_call.1} parent=1 // pred_check_branch
      %241 = sbr.rel (0) target = $region61
    $region60: #{tpu_custom_call.1} parent=1 // pred_region
      %243 = dma.done [#allocation13], 16
    $region61: #{tpu_custom_call.1} parent=1 // pred_fallthru
      _
    // Predicated region
    $region62: #{tpu_custom_call.1} parent=1 // pred_check
      _
    $region63: #{tpu_custom_call.1} parent=1 // pred_check_branch
      %245 = sbr.rel (0) target = $region65
    $region64: #{tpu_custom_call.1} parent=1 // pred_region
      %247 = dma.done [#allocation16], 16
    $region65: #{tpu_custom_call.1} parent=1 // pred_fallthru
      _
    %248 = vsyncpa [#allocation7], 1
    %249 = vsyncpa [#allocation10], 1
    %250 = vsyncpa [#allocation8], 1
    %251 = vsyncpa [#allocation13], 1
    %252 = vsyncpa [#allocation16], 1

</llo_original>
